<compile_context>
chip_gen: v7x
topology: tpu7x:2x2x1
jax: 0.10.0
libtpu: 0.0.40
codegen_flags: <defaults>
</compile_context>

<pallas_src>
import jax
import jax.numpy as jnp
from jax.experimental import pallas as pl
from jax.experimental.pallas import tpu as pltpu


def _round_up(a, b):
    return (a + b - 1) // b * b


def _pad2d(a, rows, cols):
    return jnp.pad(a, ((0, rows - a.shape[0]), (0, cols - a.shape[1])))


def _take_pad(a, rows, cols):
    """Slice a 2-D array down to (<=rows, <=cols) and zero-pad up to (rows, cols)."""
    a = a[: min(rows, a.shape[0]), : min(cols, a.shape[1])]
    if a.shape != (rows, cols):
        a = _pad2d(a, rows, cols)
    return a


def _tpu_vmem_and_cores():
    """Generation-aware VMEM capacity and TensorCore count (graceful fallback)."""
    vmem_cap = 64 * 1024 * 1024          # conservative: v7x per-TC VMEM
    num_cores = 1
    try:
        info = pltpu.get_tpu_info()
        vmem_cap = int(info.vmem_capacity_bytes)
        num_cores = int(getattr(info, "num_cores", 1) or 1)
    except Exception:
        pass
    return vmem_cap, num_cores


# ----------------------------------------------------------------------------- kernel
def _hyper_linear_kernel(x_ref, wbt_ref, vt_ref, ut_ref, b_ref, o_ref, wt_scratch):
    # Reconstruct the effective (in, out) weight tile ONCE per output-column tile.
    # The M axis (grid axis 1) is innermost and non-core-parallel, so program_id(1)==0
    # marks the first visit of this column tile on this core; the VMEM scratch
    # persists across the later M steps.
    @pl.when(pl.program_id(1) == 0)
    def _():
        w = (wbt_ref[...].astype(jnp.float32)
             + jnp.dot(vt_ref[...], ut_ref[...], preferred_element_type=jnp.float32))
        wt_scratch[...] = w.astype(wt_scratch.dtype)

    # Main MXU matmul: (tm, Kp) @ (Kp, tn), f32 accumulation. Weight is already in
    # (in, out) layout, so no in-kernel transpose. Bias is added per output tile.
    y = jnp.dot(x_ref[...], wt_scratch[...], preferred_element_type=jnp.float32)
    o_ref[...] = (y + b_ref[...]).astype(o_ref.dtype)


# ---------------------------------------------------------------------------- wrapper
_PREP_KEYS = ("_wbt_pad", "_vt_pad", "_bias_pad", "_compute_dtype")


def prepare_params(params, use_bf16_matmul=True):
    """One-time preprocessing of the constant parameters.

    Pre-transposes / pads / casts base_w and lr_factor_w so the per-call hot path
    never pays an HBM-level transpose of the big base weight. Idempotent.
    """
    cdt = jnp.bfloat16 if use_bf16_matmul else jnp.float32
    if all(k in params for k in _PREP_KEYS) and params["_compute_dtype"] == cdt:
        return params

    max_out, max_in = params["base_w"].shape
    low_rank = params["lr_factor_w"].shape[0]
    kp_max = _round_up(max_in, 128)
    np_max = _round_up(max_out, 128)
    r_pad = _round_up(low_rank, 8)

    prep = dict(params)
    prep["_wbt_pad"] = _pad2d(params["base_w"].T, kp_max, np_max).astype(cdt)      # (Kp_max, Np_max)
    prep["_vt_pad"] = _pad2d(params["lr_factor_w"].T, kp_max, r_pad).astype(cdt)   # (Kp_max, r_pad)
    prep["_bias_pad"] = _pad2d(params["base_b"].reshape(1, max_out), 1, np_max).astype(jnp.float32)
    prep["_compute_dtype"] = cdt
    return prep


def hypernet_dynamic_linear(x, params, active_out_features=None, use_bf16_matmul=True):
    """Forward pass of HyperNetDynamicLinear.

    x: [..., active_in_features]
    params: dict with base_w (out,in), base_b (out,), lr_factor_w (r,in),
            hyp_w1 (h,E), hyp_b1 (h,), hyp_w2 (out*r,h), hyp_b2 (out*r,),
            active_arch_embed (E,). Pass the result of prepare_params() to avoid
            per-call weight transposes.
    """
    params = prepare_params(params, use_bf16_matmul)
    cdt = params["_compute_dtype"]

    max_out, max_in = params["base_w"].shape
    low_rank = params["lr_factor_w"].shape[0]
    active_in = x.shape[-1]
    active_out = max_out if active_out_features is None else active_out_features

    # ---- hypernet MLP (tiny per-call parameter generator; plain JAX glue) ----
    e = params["active_arch_embed"]
    h = jnp.maximum(params["hyp_w1"] @ e + params["hyp_b1"], 0.0)      # ReLU
    hyper_out = params["hyp_w2"] @ h + params["hyp_b2"]                # (max_out*low_rank,)
    U = hyper_out.reshape(max_out, low_rank)                           # (out, r)

    # Flatten leading dims of x.
    lead_shape = x.shape[:-1]
    x2 = x.reshape(-1, active_in)                                      # (M, ai)
    M = x2.shape[0]
    out_dtype = x.dtype
    out_itemsize = jnp.dtype(out_dtype).itemsize
    cb = jnp.dtype(cdt).itemsize

    # ---- Lane/sublane-dense padded extents ----
    Kp = _round_up(active_in, 128)          # contraction depth (lane-dense loads)
    Np0 = _round_up(active_out, 128)        # output width, lane-dense
    r_pad = _round_up(low_rank, 8)          # sublane-pad the rank

    # ---- Generation-aware tile selection ----
    vmem_cap, num_cores = _tpu_vmem_and_cores()
    vmem_budget = max(12 << 20, vmem_cap - (16 << 20))
    tm_cap = 512 if vmem_cap >= (100 << 20) else 256   # bigger row tiles on 128-MiB parts

    def _est_vmem(tm_, tn_):
        return (2 * tm_ * Kp * cb            # x tile (double-buffered)
                + 2 * Kp * tn_ * cb          # W_base^T column tile
                + 2 * Kp * r_pad * cb        # V^T (resident)
                + 2 * r_pad * tn_ * cb       # U^T column tile
                + 2 * 8 * tn_ * 4            # bias (sublane-padded)
                + 2 * tm_ * tn_ * out_itemsize   # output tile
                + Kp * tn_ * cb)             # reconstructed W^T scratch

    tn_candidates = [c for c in (512, 384, 256, 128) if c <= Np0] or [128]
    if num_cores > 1 and Np0 >= 256:
        # Keep n_tiles >= 2 so the "parallel" N axis feeds every TensorCore (v7x).
        half = _round_up(Np0 // 2, 128)
        tn_candidates = [min(c, half) for c in tn_candidates]

    m_rows = _round_up(max(M, 1), 8)
    choice = None
    for tn_c in tn_candidates:
        for tm_c in (tm_cap, 256, 128, 64, 32, 16, 8):
            if tm_c > tm_cap:
                continue
            tm_eff = min(tm_c, m_rows)
            if _est_vmem(tm_eff, tn_c) <= vmem_budget:
                np_c = _round_up(Np0, tn_c)
                key = (np_c // tn_c, np_c, -tm_eff, -tn_c)   # fewest col tiles, least pad
                if choice is None or key < choice[0]:
                    choice = (key, tm_eff, tn_c)
                break
    if choice is None:
        tm, tn = min(256, m_rows), 128
    else:
        _, tm, tn = choice

    Np = _round_up(Np0, tn)
    Mp = _round_up(max(M, 1), tm)
    n_tiles = Np // tn
    m_tiles = Mp // tm

    # ---- Build padded operands (constants come pre-transposed/pre-cast) ----
    if x2.shape == (Mp, Kp) and x2.dtype == cdt:
        x_p = x2
    else:
        x_p = _pad2d(x2, Mp, Kp).astype(cdt)                           # (Mp, Kp)
    wbt_p = _take_pad(params["_wbt_pad"], Kp, Np)                      # (Kp, Np)  W_base^T
    vt_p = _take_pad(params["_vt_pad"], Kp, r_pad)                     # (Kp, r_pad)
    ut_p = _pad2d(U[:active_out, :].T, r_pad, Np).astype(cdt)          # (r_pad, Np)
    b_p = _take_pad(params["_bias_pad"], 1, Np)                        # (1, Np)  f32

    # ---- VMEM limit: never exceed physical capacity of this generation ----
    est_vmem = _est_vmem(tm, tn)
    vmem_limit = None
    if est_vmem > (12 << 20):
        vmem_limit = int(min(est_vmem + (8 << 20), vmem_cap - (2 << 20)))

    out = pl.pallas_call(
        _hyper_linear_kernel,
        out_shape=jax.ShapeDtypeStruct((Mp, Np), out_dtype),
        grid_spec=pltpu.PrefetchScalarGridSpec(
            num_scalar_prefetch=0,
            grid=(n_tiles, m_tiles),
            in_specs=[
                pl.BlockSpec((tm, Kp), lambda n, m: (m, 0)),      # x row tile
                pl.BlockSpec((Kp, tn), lambda n, m: (0, n)),      # W_base^T column tile
                pl.BlockSpec((Kp, r_pad), lambda n, m: (0, 0)),   # V^T (whole, resident)
                pl.BlockSpec((r_pad, tn), lambda n, m: (0, n)),   # U^T column tile
                pl.BlockSpec((1, tn), lambda n, m: (0, n)),       # bias tile
            ],
            out_specs=pl.BlockSpec((tm, tn), lambda n, m: (m, n)),
            scratch_shapes=[pltpu.VMEM((Kp, tn), cdt)],           # reconstructed W^T tile
        ),
        compiler_params=pltpu.CompilerParams(
            dimension_semantics=("parallel", "arbitrary"),
            vmem_limit_bytes=vmem_limit),
    )(x_p, wbt_p, vt_p, ut_p, b_p)

    out = out[:M, :active_out]
    return out.reshape(*lead_shape, active_out)


# --------------------------------------------------------------------------- test glue
def init_params(key, max_in, max_out, low_rank, n_arch_embeds, hyp_hidden):
    """Deterministic synthetic init mirroring the PyTorch module's shapes."""
    ks = jax.random.split(key, 8)
    k_in = 1.0 / jnp.sqrt(max_in)
    k_e = 1.0 / jnp.sqrt(n_arch_embeds)
    k_h = 1.0 / jnp.sqrt(hyp_hidden)
    return {
        "base_w": jax.random.uniform(ks[0], (max_out, max_in), jnp.float32, -k_in, k_in),
        "base_b": jax.random.uniform(ks[1], (max_out,), jnp.float32, -k_in, k_in),
        "lr_factor_w": 0.01 * jax.random.normal(ks[2], (low_rank, max_in), jnp.float32),
        "hyp_w1": jax.random.uniform(ks[3], (hyp_hidden, n_arch_embeds), jnp.float32, -k_e, k_e),
        "hyp_b1": jax.random.uniform(ks[4], (hyp_hidden,), jnp.float32, -k_e, k_e),
        "hyp_w2": jax.random.uniform(ks[5], (max_out * low_rank, hyp_hidden), jnp.float32, -k_h, k_h),
        "hyp_b2": jax.random.uniform(ks[6], (max_out * low_rank,), jnp.float32, -k_h, k_h),
        "active_arch_embed": jax.random.normal(ks[7], (n_arch_embeds,), jnp.float32),
    }


def _reference(x, params, active_out=None):
    """Pure-JAX reference for correctness checking."""
    max_out, _ = params["base_w"].shape
    ai = x.shape[-1]
    ao = max_out if active_out is None else active_out
    e = params["active_arch_embed"]
    h = jnp.maximum(params["hyp_w1"] @ e + params["hyp_b1"], 0.0)
    U = (params["hyp_w2"] @ h + params["hyp_b2"]).reshape(max_out, -1)
    w = params["base_w"] + U @ params["lr_factor_w"]
    w = w[:ao, :ai]
    return x @ w.T + params["base_b"][:ao]


if __name__ == "__main__":
    # Small shapes: batch=2, seq=8, hidden(in)=32, out=32, low_rank=4,
    # arch_embeds len=8, hypernet hidden=16.
    max_in, max_out = 32, 32
    low_rank, n_arch_embeds, hyp_hidden = 4, 8, 16
    batch, seq = 2, 8

    key = jax.random.PRNGKey(0)
    kp, kx = jax.random.split(key)
    params = init_params(kp, max_in, max_out, low_rank, n_arch_embeds, hyp_hidden)
    x = jax.random.normal(kx, (batch, seq, max_in), jnp.float32)

    y_ref = _reference(x, params)

    # f32 MXU path (strict tolerance).
    prep32 = prepare_params(params, use_bf16_matmul=False)
    y = jax.block_until_ready(
        hypernet_dynamic_linear(x, prep32, use_bf16_matmul=False))
    assert y.shape == (batch, seq, max_out), y.shape
    assert jnp.allclose(y, y_ref, atol=1e-5, rtol=1e-5), float(jnp.max(jnp.abs(y - y_ref)))

    # Default bf16-operand MXU path (f32 accumulation) — loose tolerance.
    prep16 = prepare_params(params, use_bf16_matmul=True)
    y_bf16 = jax.block_until_ready(hypernet_dynamic_linear(x, prep16))
    assert y_bf16.shape == (batch, seq, max_out), y_bf16.shape
    assert jnp.allclose(y_bf16, y_ref, atol=5e-2, rtol=5e-2), \
        float(jnp.max(jnp.abs(y_bf16 - y_ref)))

    print("KERNEL_OK")
</pallas_src>

<mosaic_0001>
module attributes {stable_mosaic.version = 11 : i64} {
  func.func @_hyper_linear_kernel(%arg0: i32, %arg1: i32, %arg2: memref<16x128xf32, #tpu.memory_space<vmem>>, %arg3: memref<128x128xf32, #tpu.memory_space<vmem>>, %arg4: memref<128x8xf32, #tpu.memory_space<vmem>>, %arg5: memref<8x128xf32, #tpu.memory_space<vmem>>, %arg6: memref<1x128xf32, #tpu.memory_space<vmem>>, %arg7: memref<16x128xf32, #tpu.memory_space<vmem>>, %arg8: memref<128x128xf32, #tpu.memory_space<vmem>>) attributes {dimension_semantics = [#tpu.dimension_semantics<parallel>, #tpu.dimension_semantics<arbitrary>], iteration_bounds = array<i64: 1, 1>, scalar_prefetch = 0 : i64, scratch_operands = 1 : i64, tpu.core_type = #tpu.core_type<tc>, window_params = [{transform_indices = @transform_0, window_bounds = array<i64: 16, 128>}, {transform_indices = @transform_1, window_bounds = array<i64: 128, 128>}, {pipeline_mode = #tpu.pipeline_mode<synchronous>, transform_indices = @transform_2, window_bounds = array<i64: 128, 8>}, {transform_indices = @transform_3, window_bounds = array<i64: 8, 128>}, {transform_indices = @transform_4, window_bounds = array<i64: 1, 128>}, {transform_indices = @transform_5, window_bounds = array<i64: 16, 128>}]} {
    %c0_i32 = arith.constant 0 : i32
    %0 = arith.cmpi eq, %arg1, %c0_i32 : i32
    %1 = arith.extui %0 : i1 to i32
    %c0_i32_0 = arith.constant 0 : i32
    %2 = arith.cmpi ne, %1, %c0_i32_0 : i32
    scf.if %2 {
      %c0_8 = arith.constant 0 : index
      %c0_9 = arith.constant 0 : index
      %10 = vector.load %arg3[%c0_8, %c0_9] : memref<128x128xf32, #tpu.memory_space<vmem>>, vector<128x128xf32>
      %c0_10 = arith.constant 0 : index
      %c0_11 = arith.constant 0 : index
      %11 = vector.load %arg4[%c0_10, %c0_11] : memref<128x8xf32, #tpu.memory_space<vmem>>, vector<128x8xf32>
      %c0_12 = arith.constant 0 : index
      %c0_13 = arith.constant 0 : index
      %12 = vector.load %arg5[%c0_12, %c0_13] : memref<8x128xf32, #tpu.memory_space<vmem>>, vector<8x128xf32>
      %cst_14 = arith.constant dense<0.000000e+00> : vector<128x128xf32>
      %13 = tpu.matmul %11, %12, %cst_14 {dimension_numbers = #tpu.dot_dimension_numbers<[1], [0], [0], [1], [0, 0, 1, 1], [], []>} : vector<128x8xf32>, vector<8x128xf32>, vector<128x128xf32> -> vector<128x128xf32>
      %14 = arith.addf %10, %13 : vector<128x128xf32>
      %c0_15 = arith.constant 0 : index
      %c0_16 = arith.constant 0 : index
      %15 = vector.load %arg8[%c0_15, %c0_16] : memref<128x128xf32, #tpu.memory_space<vmem>>, vector<128x128xf32>
      tpu.vector_store %arg8[%c0_15, %c0_16], %14 {strides = array<i32>} : memref<128x128xf32, #tpu.memory_space<vmem>>, vector<128x128xf32>,
    } else {
    }
    %c0 = arith.constant 0 : index
    %c0_1 = arith.constant 0 : index
    %3 = vector.load %arg2[%c0, %c0_1] : memref<16x128xf32, #tpu.memory_space<vmem>>, vector<16x128xf32>
    %c0_2 = arith.constant 0 : index
    %c0_3 = arith.constant 0 : index
    %4 = vector.load %arg8[%c0_2, %c0_3] : memref<128x128xf32, #tpu.memory_space<vmem>>, vector<128x128xf32>
    %cst = arith.constant dense<0.000000e+00> : vector<16x128xf32>
    %5 = tpu.matmul %3, %4, %cst {dimension_numbers = #tpu.dot_dimension_numbers<[1], [0], [0], [1], [0, 0, 1, 1], [], []>} : vector<16x128xf32>, vector<128x128xf32>, vector<16x128xf32> -> vector<16x128xf32>
    %c0_4 = arith.constant 0 : index
    %c0_5 = arith.constant 0 : index
    %6 = vector.load %arg6[%c0_4, %c0_5] : memref<1x128xf32, #tpu.memory_space<vmem>>, vector<1x128xf32>
    %7 = vector.broadcast %6 : vector<1x128xf32> to vector<16x128xf32>
    %8 = arith.addf %5, %7 : vector<16x128xf32>
    %c0_6 = arith.constant 0 : index
    %c0_7 = arith.constant 0 : index
    %9 = vector.load %arg7[%c0_6, %c0_7] : memref<16x128xf32, #tpu.memory_space<vmem>>, vector<16x128xf32>
    tpu.vector_store %arg7[%c0_6, %c0_7], %8 {strides = array<i32>} : memref<16x128xf32, #tpu.memory_space<vmem>>, vector<16x128xf32>,
    return
  }
  func.func @transform_0(%arg0: i32, %arg1: i32) -> (i32, i32) {
    %c0_i32 = arith.constant 0 : i32
    %c0_i32_0 = arith.constant 0 : i32
    return %arg1, %c0_i32 : i32, i32
  }
  func.func @transform_1(%arg0: i32, %arg1: i32) -> (i32, i32) {
    %c0_i32 = arith.constant 0 : i32
    %c0_i32_0 = arith.constant 0 : i32
    return %c0_i32, %arg0 : i32, i32
  }
  func.func @transform_2(%arg0: i32, %arg1: i32) -> (i32, i32) {
    %c0_i32 = arith.constant 0 : i32
    %c0_i32_0 = arith.constant 0 : i32
    %c0_i32_1 = arith.constant 0 : i32
    return %c0_i32, %c0_i32_0 : i32, i32
  }
  func.func @transform_3(%arg0: i32, %arg1: i32) -> (i32, i32) {
    %c0_i32 = arith.constant 0 : i32
    %c0_i32_0 = arith.constant 0 : i32
    return %c0_i32, %arg0 : i32, i32
  }
  func.func @transform_4(%arg0: i32, %arg1: i32) -> (i32, i32) {
    %c0_i32 = arith.constant 0 : i32
    %c0_i32_0 = arith.constant 0 : i32
    return %c0_i32, %arg0 : i32, i32
  }
  func.func @transform_5(%arg0: i32, %arg1: i32) -> (i32, i32) {
    %c0_i32 = arith.constant 0 : i32
    return %arg1, %arg0 : i32, i32
  }
}

</mosaic_0001>

<llo_original>
// kernel: tpu_custom_call.1
$region0: #{tpu_custom_call.1}
  #allocation0 [shape = 'u32[]', space=smem, size = 0x4, offset = 0x4, fixed_abs, tag = 'smem constant byte address 0x4 - core index']
  #allocation1 [shape = 'u32[144,128]{1,0:T(1,128)}', space=vmem, size = 0x12000, scoped, tag = 'internal scratch']
  #allocation2 [shape = 'f32[128,128]{1,0:T(8,128)}', space=vmem, size = 0x10000, scoped, tag = 'scratch operand']
  %s0 = inlined_call_operand.hbm [shape: f32[16,128], index: 0, kind: input, shape index: {}]
  %s1 = inlined_call_operand.vmem [shape: f32[128,128], index: 1, kind: input, shape index: {}]
  %s2 = inlined_call_operand.vmem [shape: f32[128,8], index: 2, kind: input, shape index: {}]
  %s3 = inlined_call_operand.vmem [shape: f32[8,128], index: 3, kind: input, shape index: {}]
  %s4 = inlined_call_operand.vmem [shape: f32[1,128], index: 4, kind: input, shape index: {}]
  %s5 = inlined_call_operand.hbm [shape: f32[16,128], index: 5, kind: output, shape index: {}]
  %s6 = sld [smem:[#allocation0]]
  $region38: #{tpu_custom_call.1} parent=0
    _
  %s8 = ssub.s32 1, %s6
  %s9 = scalar_select 0, %s8, %s6
  $region1: #{tpu_custom_call.1} parent=0
    #allocation3 [shape = 'u8[8192]{0}', space=vmem, size = 0x2000, scoped, tag = 'input window, operand 0, single buffered']
    #allocation4 [shape = 's32[1]{0}', space=sflag, size = 0x4, scoped, tag = 'scoped memory for tpu_custom_call.1']
    #allocation5 [shape = 's32[1]{0}', space=sflag, size = 0x4, scoped, tag = 'scoped memory for tpu_custom_call.1']
    #allocation6 [shape = 'u8[8192]{0}', space=vmem, size = 0x2000, scoped, tag = 'output window, operand 0, single buffered']
    %10 = vsyncpa [#allocation4], 0
    %11 = vsyncpa [#allocation5], 0
    // Predicated region
    $region2: #{tpu_custom_call.1} parent=1 // pred_check
      _
    $region3: #{tpu_custom_call.1} parent=1 // pred_check_branch
      %13 = sbr.rel (0) target = $region5
    $region4: #{tpu_custom_call.1} parent=1 // pred_region
      %s15 = ssub.s32 256, 256
      %16 = vsyncadd [#allocation4], %s15
      %s17 = sshll.u32 [#allocation3], 4
      %s18 = int_to_ptr.vmem [resolvable:$true] %s17
      %23 = dma.hbm_to_vmem [thread:$0]  %s0, 256, %s18, [#allocation4], 128, 128, 8
    $region5: #{tpu_custom_call.1} parent=1 // pred_fallthru
      _
    // Predicated region
    $region6: #{tpu_custom_call.1} parent=1 // pred_check
      _
    $region7: #{tpu_custom_call.1} parent=1 // pred_check_branch
      %25 = sbr.rel (0) target = $region9
    $region8: #{tpu_custom_call.1} parent=1 // pred_region
      _
    $region9: #{tpu_custom_call.1} parent=1 // pred_fallthru
      _
    // Predicated region
    $region10: #{tpu_custom_call.1} parent=1 // pred_check
      _
    $region11: #{tpu_custom_call.1} parent=1 // pred_check_branch
      %27 = sbr.rel (0) target = $region13
    $region12: #{tpu_custom_call.1} parent=1 // pred_region
      _
    $region13: #{tpu_custom_call.1} parent=1 // pred_fallthru
      _
    // Predicated region
    $region14: #{tpu_custom_call.1} parent=1 // pred_check
      _
    $region15: #{tpu_custom_call.1} parent=1 // pred_check_branch
      %29 = sbr.rel (0) target = $region17
    $region16: #{tpu_custom_call.1} parent=1 // pred_region
      _
    $region17: #{tpu_custom_call.1} parent=1 // pred_fallthru
      _
    // Predicated region
    $region18: #{tpu_custom_call.1} parent=1 // pred_check
      _
    $region19: #{tpu_custom_call.1} parent=1 // pred_check_branch
      %31 = sbr.rel (0) target = $region21
    $region20: #{tpu_custom_call.1} parent=1 // pred_region
      _
    $region21: #{tpu_custom_call.1} parent=1 // pred_fallthru
      _
    // Predicated region
    $region22: #{tpu_custom_call.1} parent=1 // pred_check
      _
    $region23: #{tpu_custom_call.1} parent=1 // pred_check_branch
      %33 = sbr.rel (0) target = $region25
    $region24: #{tpu_custom_call.1} parent=1 // pred_region
      %34 = dma.done [#allocation4], 256
    $region25: #{tpu_custom_call.1} parent=1 // pred_fallthru
      _
    %p35 = scmp.eq.s32.totalorder 0, 0
    // Predicated region
    $region26: #{tpu_custom_call.1} parent=1 // pred_check
      %p36 = pneg %p35
    $region27: #{tpu_custom_call.1} parent=1 // pred_check_branch
      %38 = sbr.rel (%p36) target = $region29
    $region28: #{tpu_custom_call.1} parent=1 // pred_region
      %v39 = vld [vmem:[%s1] sm:$0xff]
      %v40 = vld [vmem:[%s1 + $0x8] sm:$0xff]
      %v41 = vld [vmem:[%s1 + $0x10] sm:$0xff]
      %v42 = vld [vmem:[%s1 + $0x18] sm:$0xff]
      %v43 = vld [vmem:[%s1 + $0x20] sm:$0xff]
      %v44 = vld [vmem:[%s1 + $0x28] sm:$0xff]
      %v45 = vld [vmem:[%s1 + $0x30] sm:$0xff]
      %v46 = vld [vmem:[%s1 + $0x38] sm:$0xff]
      %v47 = vld [vmem:[%s1 + $0x40] sm:$0xff]
      %v48 = vld [vmem:[%s1 + $0x48] sm:$0xff]
      %v49 = vld [vmem:[%s1 + $0x50] sm:$0xff]
      %v50 = vld [vmem:[%s1 + $0x58] sm:$0xff]
      %v51 = vld [vmem:[%s1 + $0x60] sm:$0xff]
      %v52 = vld [vmem:[%s1 + $0x68] sm:$0xff]
      %v53 = vld [vmem:[%s1 + $0x70] sm:$0xff]
      %v54 = vld [vmem:[%s1 + $0x78] sm:$0xff]
      %v55 = vld [vmem:[%s2] sm:$0xff]
      %v56 = vld [vmem:[%s2 + $0x8] sm:$0xff]
      %v57 = vld [vmem:[%s2 + $0x10] sm:$0xff]
      %v58 = vld [vmem:[%s2 + $0x18] sm:$0xff]
      %v59 = vld [vmem:[%s2 + $0x20] sm:$0xff]
      %v60 = vld [vmem:[%s2 + $0x28] sm:$0xff]
      %v61 = vld [vmem:[%s2 + $0x30] sm:$0xff]
      %v62 = vld [vmem:[%s2 + $0x38] sm:$0xff]
      %v63 = vld [vmem:[%s2 + $0x40] sm:$0xff]
      %v64 = vld [vmem:[%s2 + $0x48] sm:$0xff]
      %v65 = vld [vmem:[%s2 + $0x50] sm:$0xff]
      %v66 = vld [vmem:[%s2 + $0x58] sm:$0xff]
      %v67 = vld [vmem:[%s2 + $0x60] sm:$0xff]
      %v68 = vld [vmem:[%s2 + $0x68] sm:$0xff]
      %v69 = vld [vmem:[%s2 + $0x70] sm:$0xff]
      %v70 = vld [vmem:[%s2 + $0x78] sm:$0xff]
      %v71 = vld [vmem:[%s3] sm:$0xff]
      %vm72 = vcmask 64512
      %v74 = vsel %vm72, %v55, 0
      %v77 = vsel %vm72, %v56, 0
      %v80 = vsel %vm72, %v57, 0
      %v83 = vsel %vm72, %v58, 0
      %v86 = vsel %vm72, %v59, 0
      %v89 = vsel %vm72, %v60, 0
      %v92 = vsel %vm72, %v61, 0
      %v95 = vsel %vm72, %v62, 0
      %v98 = vsel %vm72, %v63, 0
      %v101 = vsel %vm72, %v64, 0
      %v104 = vsel %vm72, %v65, 0
      %v107 = vsel %vm72, %v66, 0
      %v110 = vsel %vm72, %v67, 0
      %v113 = vsel %vm72, %v68, 0
      %v116 = vsel %vm72, %v69, 0
      %v119 = vsel %vm72, %v70, 0
      %121 = vmatprep.subr.mxu0 0.0
      %122 = vmatpush1.msra.mxu0 %v71
      %123 = vmatprep.subr.mxu0 0.0
      %124 = vmatpush1.msra.mxu0 0.0
      %125 = vmatprep.subr.mxu0 0.0
      %126 = vmatpush1.msra.mxu0 0.0
      %127 = vmatprep.subr.mxu0 0.0
      %128 = vmatpush1.msra.mxu0 0.0
      %129 = vmatprep.subr.mxu0 0.0
      %130 = vmatpush1.msra.mxu0 0.0
      %131 = vmatprep.subr.mxu0 0.0
      %132 = vmatpush1.msra.mxu0 0.0
      %133 = vmatprep.subr.mxu0 0.0
      %134 = vmatpush1.msra.mxu0 0.0
      %135 = vmatprep.subr.mxu0 0.0
      %136 = vmatpush1.msra.mxu0 0.0
      %137 = vmatprep.subr.mxu0 0.0
      %138 = vmatpush1.msra.mxu0 0.0
      %139 = vmatprep.subr.mxu0 0.0
      %140 = vmatpush1.msra.mxu0 0.0
      %141 = vmatprep.subr.mxu0 0.0
      %142 = vmatpush1.msra.mxu0 0.0
      %143 = vmatprep.subr.mxu0 0.0
      %144 = vmatpush1.msra.mxu0 0.0
      %145 = vmatprep.subr.mxu0 0.0
      %146 = vmatpush1.msra.mxu0 0.0
      %147 = vmatprep.subr.mxu0 0.0
      %148 = vmatpush1.msra.mxu0 0.0
      %149 = vmatprep.subr.mxu0 0.0
      %150 = vmatpush1.msra.mxu0 0.0
      %151 = vmatprep.subr.mxu0 0.0
      %152 = vmatpush1.msra.mxu0 0.0
      %153 = vmatprep.subr.mxu0 0.0
      %154 = vmatpush1.msra.mxu0 0.0
      %155 = vmatprep.subr.mxu0 0.0
      %156 = vmatpush1.msra.mxu0 0.0
      %157 = vmatprep.subr.mxu0 0.0
      %158 = vmatpush1.msra.mxu0 0.0
      %159 = vmatprep.subr.mxu0 0.0
      %160 = vmatpush1.msra.mxu0 0.0
      %161 = vmatprep.subr.mxu0 0.0
      %162 = vmatpush1.msra.mxu0 0.0
      %163 = vmatprep.subr.mxu0 0.0
      %164 = vmatpush1.msra.mxu0 0.0
      %165 = vmatprep.subr.mxu0 0.0
      %166 = vmatpush1.msra.mxu0 0.0
      %167 = vmatprep.subr.mxu0 0.0
      %168 = vmatpush1.msra.mxu0 0.0
      %169 = vmatprep.subr.mxu0 0.0
      %170 = vmatpush1.msra.mxu0 0.0
      %171 = vmatprep.subr.mxu0 0.0
      %172 = vmatpush1.msra.mxu0 0.0
      %173 = vmatprep.subr.mxu0 0.0
      %174 = vmatpush1.msra.mxu0 0.0
      %175 = vmatprep.subr.mxu0 0.0
      %176 = vmatpush1.msra.mxu0 0.0
      %177 = vmatprep.subr.mxu0 0.0
      %178 = vmatpush1.msra.mxu0 0.0
      %179 = vmatprep.subr.mxu0 0.0
      %180 = vmatpush1.msra.mxu0 0.0
      %181 = vmatprep.subr.mxu0 0.0
      %182 = vmatpush1.msra.mxu0 0.0
      %183 = vmatprep.subr.mxu0 0.0
      %184 = vmatpush1.msra.mxu0 0.0
      %185 = vmatprep.mubr.f32.mxu0 0.0
      %186 = vmatmul.mubr.f32.gmra.mrb[0].mxu0 %v74
      %v187 = vpop.f32.mrb[0].mxu0
      %v188 = vadd.f32 0.0, %v187
      %v189 = vpop.f32.mrb[0].mxu0
      %190 = vmatprep.mubr.f32.mxu0 0.0
      %191 = vmatmul.mubr.f32.gmra.mrb[0].mxu0 %v77
      %v192 = vpop.f32.mrb[0].mxu0
      %v193 = vadd.f32 0.0, %v192
      %v194 = vpop.f32.mrb[0].mxu0
      %195 = vmatprep.mubr.f32.mxu0 0.0
      %196 = vmatmul.mubr.f32.gmra.mrb[0].mxu0 %v80
      %v197 = vpop.f32.mrb[0].mxu0
      %v198 = vadd.f32 0.0, %v197
      %v199 = vpop.f32.mrb[0].mxu0
      %200 = vmatprep.mubr.f32.mxu0 0.0
      %201 = vmatmul.mubr.f32.gmra.mrb[0].mxu0 %v83
      %v202 = vpop.f32.mrb[0].mxu0
      %v203 = vadd.f32 0.0, %v202
      %v204 = vpop.f32.mrb[0].mxu0
      %205 = vmatprep.mubr.f32.mxu0 0.0
      %206 = vmatmul.mubr.f32.gmra.mrb[0].mxu0 %v86
      %v207 = vpop.f32.mrb[0].mxu0
      %v208 = vadd.f32 0.0, %v207
      %v209 = vpop.f32.mrb[0].mxu0
      %210 = vmatprep.mubr.f32.mxu0 0.0
      %211 = vmatmul.mubr.f32.gmra.mrb[0].mxu0 %v89
      %v212 = vpop.f32.mrb[0].mxu0
      %v213 = vadd.f32 0.0, %v212
      %v214 = vpop.f32.mrb[0].mxu0
      %215 = vmatprep.mubr.f32.mxu0 0.0
      %216 = vmatmul.mubr.f32.gmra.mrb[0].mxu0 %v92
      %v217 = vpop.f32.mrb[0].mxu0
      %v218 = vadd.f32 0.0, %v217
      %v219 = vpop.f32.mrb[0].mxu0
      %220 = vmatprep.mubr.f32.mxu0 0.0
      %221 = vmatmul.mubr.f32.gmra.mrb[0].mxu0 %v95
      %v222 = vpop.f32.mrb[0].mxu0
      %v223 = vadd.f32 0.0, %v222
      %v224 = vpop.f32.mrb[0].mxu0
      %225 = vmatprep.mubr.f32.mxu0 0.0
      %226 = vmatmul.mubr.f32.gmra.mrb[0].mxu0 %v98
      %v227 = vpop.f32.mrb[0].mxu0
      %v228 = vadd.f32 0.0, %v227
      %v229 = vpop.f32.mrb[0].mxu0
      %230 = vmatprep.mubr.f32.mxu0 0.0
      %231 = vmatmul.mubr.f32.gmra.mrb[0].mxu0 %v101
      %v232 = vpop.f32.mrb[0].mxu0
      %v233 = vadd.f32 0.0, %v232
      %v234 = vpop.f32.mrb[0].mxu0
      %235 = vmatprep.mubr.f32.mxu0 0.0
      %236 = vmatmul.mubr.f32.gmra.mrb[0].mxu0 %v104
      %v237 = vpop.f32.mrb[0].mxu0
      %v238 = vadd.f32 0.0, %v237
      %v239 = vpop.f32.mrb[0].mxu0
      %240 = vmatprep.mubr.f32.mxu0 0.0
      %241 = vmatmul.mubr.f32.gmra.mrb[0].mxu0 %v107
      %v242 = vpop.f32.mrb[0].mxu0
      %v243 = vadd.f32 0.0, %v242
      %v244 = vpop.f32.mrb[0].mxu0
      %245 = vmatprep.mubr.f32.mxu0 0.0
      %246 = vmatmul.mubr.f32.gmra.mrb[0].mxu0 %v110
      %v247 = vpop.f32.mrb[0].mxu0
      %v248 = vadd.f32 0.0, %v247
      %v249 = vpop.f32.mrb[0].mxu0
      %250 = vmatprep.mubr.f32.mxu0 0.0
      %251 = vmatmul.mubr.f32.gmra.mrb[0].mxu0 %v113
      %v252 = vpop.f32.mrb[0].mxu0
      %v253 = vadd.f32 0.0, %v252
      %v254 = vpop.f32.mrb[0].mxu0
      %255 = vmatprep.mubr.f32.mxu0 0.0
      %256 = vmatmul.mubr.f32.gmra.mrb[0].mxu0 %v116
      %v257 = vpop.f32.mrb[0].mxu0
      %v258 = vadd.f32 0.0, %v257
      %v259 = vpop.f32.mrb[0].mxu0
      %260 = vmatprep.mubr.f32.mxu0 0.0
      %261 = vmatmul.mubr.f32.gmra.mrb[0].mxu0 %v119
      %v262 = vpop.f32.mrb[0].mxu0
      %v263 = vadd.f32 0.0, %v262
      %v264 = vpop.f32.mrb[0].mxu0
      %265 = vdwg.mxu0
      %v266 = vadd.f32 %v39, %v188
      %v267 = vadd.f32 %v40, %v193
      %v268 = vadd.f32 %v41, %v198
      %v269 = vadd.f32 %v42, %v203
      %v270 = vadd.f32 %v43, %v208
      %v271 = vadd.f32 %v44, %v213
      %v272 = vadd.f32 %v45, %v218
      %v273 = vadd.f32 %v46, %v223
      %v274 = vadd.f32 %v47, %v228
      %v275 = vadd.f32 %v48, %v233
      %v276 = vadd.f32 %v49, %v238
      %v277 = vadd.f32 %v50, %v243
      %v278 = vadd.f32 %v51, %v248
      %v279 = vadd.f32 %v52, %v253
      %v280 = vadd.f32 %v53, %v258
      %v281 = vadd.f32 %v54, %v263
      %282 = vst [vmem:[#allocation2] sm:$0xff] %v266
      %283 = vst [vmem:[#allocation2 + $0x8] sm:$0xff] %v267
      %284 = vst [vmem:[#allocation2 + $0x10] sm:$0xff] %v268
      %285 = vst [vmem:[#allocation2 + $0x18] sm:$0xff] %v269
      %286 = vst [vmem:[#allocation2 + $0x20] sm:$0xff] %v270
      %287 = vst [vmem:[#allocation2 + $0x28] sm:$0xff] %v271
      %288 = vst [vmem:[#allocation2 + $0x30] sm:$0xff] %v272
      %289 = vst [vmem:[#allocation2 + $0x38] sm:$0xff] %v273
      %290 = vst [vmem:[#allocation2 + $0x40] sm:$0xff] %v274
      %291 = vst [vmem:[#allocation2 + $0x48] sm:$0xff] %v275
      %292 = vst [vmem:[#allocation2 + $0x50] sm:$0xff] %v276
      %293 = vst [vmem:[#allocation2 + $0x58] sm:$0xff] %v277
      %294 = vst [vmem:[#allocation2 + $0x60] sm:$0xff] %v278
      %295 = vst [vmem:[#allocation2 + $0x68] sm:$0xff] %v279
      %296 = vst [vmem:[#allocation2 + $0x70] sm:$0xff] %v280
      %297 = vst [vmem:[#allocation2 + $0x78] sm:$0xff] %v281
    $region29: #{tpu_custom_call.1} parent=1 // pred_fallthru
      _
    %v298 = vld [vmem:[#allocation3] sm:$0xff]
    %v299 = vld [vmem:[#allocation3 + $0x8] sm:$0xff]
    %v300 = vld [vmem:[#allocation2] sm:$0xff]
    %v301 = vld [vmem:[#allocation2 + $0x8] sm:$0xff]
    %v302 = vld [vmem:[#allocation2 + $0x10] sm:$0xff]
    %v303 = vld [vmem:[#allocation2 + $0x18] sm:$0xff]
    %v304 = vld [vmem:[#allocation2 + $0x20] sm:$0xff]
    %v305 = vld [vmem:[#allocation2 + $0x28] sm:$0xff]
    %v306 = vld [vmem:[#allocation2 + $0x30] sm:$0xff]
    %v307 = vld [vmem:[#allocation2 + $0x38] sm:$0xff]
    %v308 = vld [vmem:[#allocation2 + $0x40] sm:$0xff]
    %v309 = vld [vmem:[#allocation2 + $0x48] sm:$0xff]
    %v310 = vld [vmem:[#allocation2 + $0x50] sm:$0xff]
    %v311 = vld [vmem:[#allocation2 + $0x58] sm:$0xff]
    %v312 = vld [vmem:[#allocation2 + $0x60] sm:$0xff]
    %v313 = vld [vmem:[#allocation2 + $0x68] sm:$0xff]
    %v314 = vld [vmem:[#allocation2 + $0x70] sm:$0xff]
    %v315 = vld [vmem:[#allocation2 + $0x78] sm:$0xff]
    %v316 = vld [vmem:[%s4] sm:$0x1]
    %v318 = vlaneseq
    %v319 = vshrl.u32 %v318, 7
    %v320 = vsub.s32 0, %v319
    %v321 = vrot.slane %v316, %v320
    %323 = vmatprep.subr.mxu0 0.0
    %324 = vmatpush1.msra.mxu0 %v300
    %325 = vmatprep.subr.mxu0 0.0
    %326 = vmatpush1.msra.mxu0 %v301
    %327 = vmatprep.subr.mxu0 0.0
    %328 = vmatpush1.msra.mxu0 %v302
    %329 = vmatprep.subr.mxu0 0.0
    %330 = vmatpush1.msra.mxu0 %v303
    %331 = vmatprep.subr.mxu0 0.0
    %332 = vmatpush1.msra.mxu0 %v304
    %333 = vmatprep.subr.mxu0 0.0
    %334 = vmatpush1.msra.mxu0 %v305
    %335 = vmatprep.subr.mxu0 0.0
    %336 = vmatpush1.msra.mxu0 %v306
    %337 = vmatprep.subr.mxu0 0.0
    %338 = vmatpush1.msra.mxu0 %v307
    %339 = vmatprep.subr.mxu0 0.0
    %340 = vmatpush1.msra.mxu0 %v308
    %341 = vmatprep.subr.mxu0 0.0
    %342 = vmatpush1.msra.mxu0 %v309
    %343 = vmatprep.subr.mxu0 0.0
    %344 = vmatpush1.msra.mxu0 %v310
    %345 = vmatprep.subr.mxu0 0.0
    %346 = vmatpush1.msra.mxu0 %v311
    %347 = vmatprep.subr.mxu0 0.0
    %348 = vmatpush1.msra.mxu0 %v312
    %349 = vmatprep.subr.mxu0 0.0
    %350 = vmatpush1.msra.mxu0 %v313
    %351 = vmatprep.subr.mxu0 0.0
    %352 = vmatpush1.msra.mxu0 %v314
    %353 = vmatprep.subr.mxu0 0.0
    %354 = vmatpush1.msra.mxu0 %v315
    %355 = vmatprep.subr.mxu0 0.0
    %356 = vmatpush1.msra.mxu0 0.0
    %357 = vmatprep.subr.mxu0 0.0
    %358 = vmatpush1.msra.mxu0 0.0
    %359 = vmatprep.subr.mxu0 0.0
    %360 = vmatpush1.msra.mxu0 0.0
    %361 = vmatprep.subr.mxu0 0.0
    %362 = vmatpush1.msra.mxu0 0.0
    %363 = vmatprep.subr.mxu0 0.0
    %364 = vmatpush1.msra.mxu0 0.0
    %365 = vmatprep.subr.mxu0 0.0
    %366 = vmatpush1.msra.mxu0 0.0
    %367 = vmatprep.subr.mxu0 0.0
    %368 = vmatpush1.msra.mxu0 0.0
    %369 = vmatprep.subr.mxu0 0.0
    %370 = vmatpush1.msra.mxu0 0.0
    %371 = vmatprep.subr.mxu0 0.0
    %372 = vmatpush1.msra.mxu0 0.0
    %373 = vmatprep.subr.mxu0 0.0
    %374 = vmatpush1.msra.mxu0 0.0
    %375 = vmatprep.subr.mxu0 0.0
    %376 = vmatpush1.msra.mxu0 0.0
    %377 = vmatprep.subr.mxu0 0.0
    %378 = vmatpush1.msra.mxu0 0.0
    %379 = vmatprep.subr.mxu0 0.0
    %380 = vmatpush1.msra.mxu0 0.0
    %381 = vmatprep.subr.mxu0 0.0
    %382 = vmatpush1.msra.mxu0 0.0
    %383 = vmatprep.subr.mxu0 0.0
    %384 = vmatpush1.msra.mxu0 0.0
    %385 = vmatprep.subr.mxu0 0.0
    %386 = vmatpush1.msra.mxu0 0.0
    %387 = vmatprep.mubr.f32.mxu0 0.0
    %388 = vmatmul.mubr.f32.gmra.mrb[0].mxu0 %v298
    %v389 = vpop.f32.mrb[0].mxu0
    %v390 = vadd.f32 %v321, %v389
    %v391 = vpop.f32.mrb[0].mxu0
    %392 = vmatprep.mubr.f32.mxu0 0.0
    %393 = vmatmul.mubr.f32.gmra.mrb[0].mxu0 %v299
    %v394 = vpop.f32.mrb[0].mxu0
    %v395 = vadd.f32 %v321, %v394
    %v396 = vpop.f32.mrb[0].mxu0
    %397 = vdwg.mxu0
    %398 = vst [vmem:[#allocation6] sm:$0xff] %v390
    %399 = vst [vmem:[#allocation6 + $0x8] sm:$0xff] %v395
    // Predicated region
    $region30: #{tpu_custom_call.1} parent=1 // pred_check
      _
    $region31: #{tpu_custom_call.1} parent=1 // pred_check_branch
      %401 = sbr.rel (0) target = $region33
    $region32: #{tpu_custom_call.1} parent=1 // pred_region
      %s403 = ssub.s32 256, 256
      %404 = vsyncadd [#allocation5], %s403
      %s405 = sshll.u32 [#allocation6], 4
      %s406 = int_to_ptr.vmem [resolvable:$true] %s405
      %411 = dma.vmem_to_hbm [thread:$0]  %s406, 256, %s5, [#allocation5], 128, 128, 8
    $region33: #{tpu_custom_call.1} parent=1 // pred_fallthru
      _
    // Predicated region
    $region34: #{tpu_custom_call.1} parent=1 // pred_check
      _
    $region35: #{tpu_custom_call.1} parent=1 // pred_check_branch
      %413 = sbr.rel (0) target = $region37
    $region36: #{tpu_custom_call.1} parent=1 // pred_region
      %414 = dma.done [#allocation5], 256
    $region37: #{tpu_custom_call.1} parent=1 // pred_fallthru
      _
    %415 = vsyncpa [#allocation4], 1
    %416 = vsyncpa [#allocation5], 1

</llo_original>
